<compile_context>
chip_gen: v6e
topology: v6e:2x2x1
jax: 0.10.0
libtpu: 0.0.40
codegen_flags: <defaults>
</compile_context>

<pallas_src>
import functools

import jax
import jax.numpy as jnp
from jax.experimental import pallas as pl
from jax.experimental.pallas import tpu as pltpu


def _pooling_kernel(*refs, TS, use_cls, use_max, use_mean, use_mean_sqrt):
    # refs layout (cls input only present when use_cls):
    #   lens_ref: (TB, 1)      int32  per-row valid token count
    #   te_ref:   (TB, TS, D)  native dtype token embeddings (seq tile)
    #   cls_ref:  (TB, D)      native dtype CLS embeddings         [optional]
    #   out_ref:  (TB, mult*D) output slab (native dtype)
    #   max_acc:  (TB, D) f32 VMEM scratch (running max over seq tiles)
    #   sum_acc:  (TB, D) f32 VMEM scratch (running masked sum over seq tiles)
    if use_cls:
        lens_ref, te_ref, cls_ref, out_ref, max_acc, sum_acc = refs
    else:
        lens_ref, te_ref, out_ref, max_acc, sum_acc = refs
        cls_ref = None

    s = pl.program_id(1)
    ns = pl.num_programs(1)

    @pl.when(s == 0)
    def _init():
        if use_max:
            max_acc[...] = jnp.full_like(max_acc, -1e9)
        if use_mean or use_mean_sqrt:
            sum_acc[...] = jnp.zeros_like(sum_acc)

    lens = lens_ref[...]                                   # (TB, 1) int32
    te_nat = te_ref[...]                                   # (TB, TS, D) native
    TB, _, D = te_nat.shape

    # Lane-dense validity mask for this sequence tile (pure VPU iota+compare,
    # no lane-1 vreg + broadcast relayout in the inner loop).
    pos = jax.lax.broadcasted_iota(jnp.int32, (TB, TS, D), 1) + s * TS
    valid = pos < lens[:, :, None]                         # (TB, TS, D) bool

    if use_max:
        # Max path stays in the native dtype (bf16 max/compare is exact), so
        # no full-tile f32 temporary is materialized on this path.
        sentinel = jnp.asarray(-1e9, dtype=te_nat.dtype)
        tile_max = jnp.max(jnp.where(valid, te_nat, sentinel), axis=1)
        max_acc[...] = jnp.maximum(max_acc[...], tile_max.astype(jnp.float32))

    if use_mean or use_mean_sqrt:
        # Sum path upcasts to f32 for accuracy; the f32 live set is bounded by
        # the modest TS chosen in the wrapper (~2-4 MiB native input blocks).
        te_f32 = te_nat.astype(jnp.float32)
        sum_acc[...] = sum_acc[...] + jnp.sum(
            jnp.where(valid, te_f32, jnp.float32(0.0)), axis=1)

    @pl.when(s == ns - 1)
    def _finalize():
        parts = []
        if use_cls:
            parts.append(cls_ref[...].astype(jnp.float32))
        if use_max:
            parts.append(max_acc[...])
        if use_mean or use_mean_sqrt:
            sum_mask = jnp.maximum(lens.astype(jnp.float32), jnp.float32(1e-9))
            if use_mean:
                # Exact divide: runs once per (TB,1) block, approx saving is nil.
                parts.append(sum_acc[...] / sum_mask)
            if use_mean_sqrt:
                parts.append(sum_acc[...] / jnp.sqrt(sum_mask))
        # Single wide, lane-dense store of the concatenated pooled vectors.
        out_ref[...] = jnp.concatenate(parts, axis=-1).astype(out_ref.dtype)


def _vmem_limit_bytes():
    """70% of physical VMEM (generation-aware), conservative fallback = v7x."""
    cap = 64 << 20  # v7x physical per-TC VMEM (smallest of v5e/v6e/v7x)
    try:
        cap = int(pltpu.get_tpu_info().vmem_capacity_bytes)
    except Exception:
        pass
    return int(cap * 0.70)


def pooling_forward(token_embeddings, attention_mask, cls_token, *,
                    pooling_mode_cls_token=False,
                    pooling_mode_max_tokens=False,
                    pooling_mode_mean_tokens=True,
                    pooling_mode_mean_sqrt_len_tokens=False,
                    batch_block=16, seq_block=None):
    """JAX/Pallas equivalent of Pooling.forward (non-weighted modes).

    Returns dict with 'sentence_embedding' [B, mult*D] (same dtype as the
    token embeddings) and 'sentence_lengths' [B].
    """
    # TODO(synk): pooling_mode_weighted_tokens needs pickle weight files and
    # data-dependent per-sentence numpy loops -> no clean Pallas equivalent.
    # TODO(synk): 'token_weights_sum' override of sum_mask not supported here.
    B, S, D = token_embeddings.shape
    use_cls = bool(pooling_mode_cls_token)
    use_max = bool(pooling_mode_max_tokens)
    use_mean = bool(pooling_mode_mean_tokens)
    use_mean_sqrt = bool(pooling_mode_mean_sqrt_len_tokens)
    mult = sum([use_cls, use_max, use_mean, use_mean_sqrt])
    assert mult >= 1, "at least one pooling mode must be enabled"
    out_dtype = token_embeddings.dtype

    # Single tiny pass over the mask; doubles as the kernel's per-row length
    # input, so the full [B, S] mask is never DMA'd through the grid.
    sentence_lengths = jnp.sum(attention_mask, axis=1)

    # cls-only configuration: the token-embedding stream is never touched
    # (streaming it through the grid would be 100% wasted HBM traffic).
    if use_cls and not (use_max or use_mean or use_mean_sqrt):
        return {"sentence_embedding": cls_token.reshape(B, D),
                "sentence_lengths": sentence_lengths}

    lens_i = sentence_lengths.astype(jnp.int32).reshape(B, 1)
    out_dim = mult * D
    itemsize = jnp.dtype(out_dtype).itemsize
    pack = max(8, 32 // itemsize)  # sublane packing: 8 f32 / 16 bf16 / 32 int8

    # ---- batch blocking -------------------------------------------------
    # TB must be a multiple of 8 (sublane) or equal B. Prefer full dtype
    # packing and >=2 batch blocks so v7x's two TensorCores both get work.
    if B < 2 * pack:
        TB = B if B <= pack else pack
    else:
        TB = max(pack, min(batch_block, B // 2) // pack * pack)

    # ---- VMEM budget / sequence tiling ----------------------------------
    vmem_limit = _vmem_limit_bytes()
    # ~2-4 MiB native-dtype input blocks already reach ~85% of HBM roofline
    # while keeping the in-kernel f32 temporaries (sum path) small on v7x.
    budget = max(512 << 10, min(4 << 20, vmem_limit // 16))

    if seq_block is not None:
        TS = min(S, max(8, (int(seq_block) // 8) * 8))
    else:
        ts_cap = max(pack, (budget // max(1, TB * D * itemsize)) // pack * pack)
        TS = S if S <= ts_cap else ts_cap

    grid = (pl.cdiv(B, TB), pl.cdiv(S, TS))

    in_specs = [
        pl.BlockSpec((TB, 1), lambda b, s: (b, 0)),          # lengths
        pl.BlockSpec((TB, TS, D), lambda b, s: (b, s, 0)),    # token embeddings
    ]
    args = [lens_i, token_embeddings]
    if use_cls:
        in_specs.append(pl.BlockSpec((TB, D), lambda b, s: (b, 0)))
        args.append(cls_token.reshape(B, D))
    # (when use_cls is False the cls tensor is never DMA'd at all)

    kernel = functools.partial(
        _pooling_kernel, TS=TS,
        use_cls=use_cls, use_max=use_max,
        use_mean=use_mean, use_mean_sqrt=use_mean_sqrt)

    out = pl.pallas_call(
        kernel,
        out_shape=jax.ShapeDtypeStruct((B, out_dim), out_dtype),
        grid=grid,
        in_specs=in_specs,
        out_specs=pl.BlockSpec((TB, out_dim), lambda b, s: (b, 0)),
        scratch_shapes=[pltpu.VMEM((TB, D), jnp.float32),     # running max
                        pltpu.VMEM((TB, D), jnp.float32)],    # running sum
        compiler_params=pltpu.CompilerParams(
            dimension_semantics=("parallel", "arbitrary"),
            vmem_limit_bytes=vmem_limit),
    )(*args)

    return {"sentence_embedding": out,
            "sentence_lengths": sentence_lengths}


def _reference_forward(token_embeddings, attention_mask, cls_token, *,
                       pooling_mode_cls_token=False,
                       pooling_mode_max_tokens=False,
                       pooling_mode_mean_tokens=True,
                       pooling_mode_mean_sqrt_len_tokens=False):
    """Pure-jnp reference mirroring the torch semantics, for validation."""
    te = token_embeddings.astype(jnp.float32)
    mask = attention_mask.astype(jnp.float32)[:, :, None]  # (B, S, 1)
    outs = []
    if pooling_mode_cls_token:
        outs.append(cls_token.astype(jnp.float32))
    if pooling_mode_max_tokens:
        masked = jnp.where(mask == 0.0, -1e9, te)
        outs.append(jnp.max(masked, axis=1))
    if pooling_mode_mean_tokens or pooling_mode_mean_sqrt_len_tokens:
        sum_emb = jnp.sum(te * mask, axis=1)
        sum_mask = jnp.maximum(jnp.sum(mask, axis=1), 1e-9)
        if pooling_mode_mean_tokens:
            outs.append(sum_emb / sum_mask)
        if pooling_mode_mean_sqrt_len_tokens:
            outs.append(sum_emb / jnp.sqrt(sum_mask))
    return jnp.concatenate(outs, axis=1)


if __name__ == "__main__":
    B, S, D = 8, 16, 64
    key = jax.random.PRNGKey(0)
    k_te, k_cls = jax.random.split(key)

    token_embeddings = jax.random.normal(k_te, (B, S, D), dtype=jnp.float32)
    cls_token = jax.random.normal(k_cls, (B, D), dtype=jnp.float32)
    # deterministic ragged (padding) attention mask
    lengths = jnp.array([5, 16, 1, 9, 12, 3, 16, 7], dtype=jnp.int32)
    attention_mask = (jnp.arange(S)[None, :] < lengths[:, None]).astype(jnp.int32)

    flags = dict(
        pooling_mode_cls_token=True,
        pooling_mode_max_tokens=True,
        pooling_mode_mean_tokens=True,
        pooling_mode_mean_sqrt_len_tokens=True,
    )

    ref = _reference_forward(token_embeddings, attention_mask, cls_token, **flags)

    # --- f32 path, all four modes, single sequence tile ---
    feats = pooling_forward(token_embeddings, attention_mask, cls_token, **flags)
    sent_emb = jax.block_until_ready(feats["sentence_embedding"])
    sent_len = jax.block_until_ready(feats["sentence_lengths"])
    assert sent_emb.shape == (B, 4 * D), sent_emb.shape
    assert sent_len.shape == (B,)
    assert jnp.allclose(sent_emb, ref, atol=1e-5, rtol=1e-5), "f32 mismatch vs reference"
    assert jnp.array_equal(sent_len, lengths)

    # --- f32 path, forced multi-tile sequence reduction (seq_block=8) ---
    feats_t = pooling_forward(token_embeddings, attention_mask, cls_token,
                              seq_block=8, **flags)
    emb_t = jax.block_until_ready(feats_t["sentence_embedding"])
    assert jnp.allclose(emb_t, ref, atol=1e-5, rtol=1e-5), "multi-tile mismatch"

    # --- bf16 path: native-dtype DMA, f32 sum / native max inside kernel ---
    te_bf = token_embeddings.astype(jnp.bfloat16)
    cls_bf = cls_token.astype(jnp.bfloat16)
    feats_bf = pooling_forward(te_bf, attention_mask, cls_bf, **flags)
    emb_bf = jax.block_until_ready(feats_bf["sentence_embedding"])
    assert emb_bf.dtype == jnp.bfloat16
    ref_bf = _reference_forward(te_bf, attention_mask, cls_bf, **flags)
    assert jnp.allclose(emb_bf.astype(jnp.float32), ref_bf, atol=1e-2, rtol=1e-2), \
        "bf16 mismatch vs reference"

    # --- mean-only mode (exercises the no-cls-DMA path) ---
    feats_mean = pooling_forward(token_embeddings, attention_mask, cls_token,
                                 pooling_mode_mean_tokens=True)
    emb_mean = jax.block_until_ready(feats_mean["sentence_embedding"])
    ref_mean = _reference_forward(token_embeddings, attention_mask, cls_token,
                                  pooling_mode_mean_tokens=True)
    assert emb_mean.shape == (B, D)
    assert jnp.allclose(emb_mean, ref_mean, atol=1e-5, rtol=1e-5), "mean-only mismatch"

    # --- cls-only short-circuit (no token-embedding HBM traffic at all) ---
    feats_cls = pooling_forward(token_embeddings, attention_mask, cls_token,
                                pooling_mode_cls_token=True,
                                pooling_mode_mean_tokens=False)
    emb_cls = jax.block_until_ready(feats_cls["sentence_embedding"])
    assert jnp.array_equal(emb_cls, cls_token), "cls-only mismatch"

    print("KERNEL_OK")
</pallas_src>

<mosaic_0001>
module attributes {stable_mosaic.version = 11 : i64} {
  func.func @_pooling_kernel(%arg0: i32, %arg1: i32, %arg2: memref<8x1xi32, #tpu.memory_space<vmem>>, %arg3: memref<8x16x64xf32, #tpu.memory_space<vmem>>, %arg4: memref<8x64xf32, #tpu.memory_space<vmem>>, %arg5: memref<8x256xf32, #tpu.memory_space<vmem>>, %arg6: memref<8x64xf32, #tpu.memory_space<vmem>>, %arg7: memref<8x64xf32, #tpu.memory_space<vmem>>) attributes {dimension_semantics = [#tpu.dimension_semantics<parallel>, #tpu.dimension_semantics<arbitrary>], iteration_bounds = array<i64: 1, 1>, scalar_prefetch = 0 : i64, scratch_operands = 2 : i64, tpu.core_type = #tpu.core_type<tc>, window_params = [{transform_indices = @transform_0, window_bounds = array<i64: 8, 1>}, {transform_indices = @transform_1, window_bounds = array<i64: 8, 16, 64>}, {transform_indices = @transform_2, window_bounds = array<i64: 8, 64>}, {transform_indices = @transform_3, window_bounds = array<i64: 8, 256>}]} {
    %c0_i32 = arith.constant 0 : i32
    %0 = arith.cmpi eq, %arg1, %c0_i32 : i32
    %1 = arith.extui %0 : i1 to i32
    %c0_i32_0 = arith.constant 0 : i32
    %2 = arith.cmpi ne, %1, %c0_i32_0 : i32
    scf.if %2 {
      %cst_18 = arith.constant -1.000000e+09 : f32
      %27 = vector.broadcast %cst_18 : f32 to vector<8x64xf32>
      %c0_19 = arith.constant 0 : index
      %c0_20 = arith.constant 0 : index
      %28 = vector.load %arg6[%c0_19, %c0_20] : memref<8x64xf32, #tpu.memory_space<vmem>>, vector<8x64xf32>
      tpu.vector_store %arg6[%c0_19, %c0_20], %27 {strides = array<i32>} : memref<8x64xf32, #tpu.memory_space<vmem>>, vector<8x64xf32>,
      %cst_21 = arith.constant 0.000000e+00 : f32
      %29 = vector.broadcast %cst_21 : f32 to vector<8x64xf32>
      %c0_22 = arith.constant 0 : index
      %c0_23 = arith.constant 0 : index
      %30 = vector.load %arg7[%c0_22, %c0_23] : memref<8x64xf32, #tpu.memory_space<vmem>>, vector<8x64xf32>
      tpu.vector_store %arg7[%c0_22, %c0_23], %29 {strides = array<i32>} : memref<8x64xf32, #tpu.memory_space<vmem>>, vector<8x64xf32>,
    } else {
    }
    %c0 = arith.constant 0 : index
    %c0_1 = arith.constant 0 : index
    %3 = vector.load %arg2[%c0, %c0_1] : memref<8x1xi32, #tpu.memory_space<vmem>>, vector<8x1xi32>
    %c0_2 = arith.constant 0 : index
    %c0_3 = arith.constant 0 : index
    %c0_4 = arith.constant 0 : index
    %4 = vector.load %arg3[%c0_2, %c0_3, %c0_4] : memref<8x16x64xf32, #tpu.memory_space<vmem>>, vector<8x16x64xf32>
    %5 = tpu.iota {dimensions = array<i32: 1>} : vector<8x16x64xi32>
    %c16_i32 = arith.constant 16 : i32
    %6 = arith.muli %arg1, %c16_i32 : i32
    %7 = vector.broadcast %6 : i32 to vector<8x16x64xi32>
    %8 = arith.addi %5, %7 : vector<8x16x64xi32>
    %9 = vector.shape_cast %3 : vector<8x1xi32> to vector<8x1x1xi32>
    %10 = vector.broadcast %9 : vector<8x1x1xi32> to vector<8x16x64xi32>
    %11 = arith.cmpi slt, %8, %10 : vector<8x16x64xi32>
    %cst = arith.constant -1.000000e+09 : f32
    %12 = vector.broadcast %cst : f32 to vector<8x16x64xf32>
    %13 = arith.select %11, %4, %12 : vector<8x16x64xi1>, vector<8x16x64xf32>
    %cst_5 = arith.constant dense<0xFF800000> : vector<8x64xf32>
    %14 = vector.multi_reduction <maximumf>, %13, %cst_5 [1] : vector<8x16x64xf32> to vector<8x64xf32>
    %c0_6 = arith.constant 0 : index
    %c0_7 = arith.constant 0 : index
    %15 = vector.load %arg6[%c0_6, %c0_7] : memref<8x64xf32, #tpu.memory_space<vmem>>, vector<8x64xf32>
    %16 = arith.maximumf %15, %14 : vector<8x64xf32>
    %c0_8 = arith.constant 0 : index
    %c0_9 = arith.constant 0 : index
    %17 = vector.load %arg6[%c0_8, %c0_9] : memref<8x64xf32, #tpu.memory_space<vmem>>, vector<8x64xf32>
    tpu.vector_store %arg6[%c0_8, %c0_9], %16 {strides = array<i32>} : memref<8x64xf32, #tpu.memory_space<vmem>>, vector<8x64xf32>,
    %c0_10 = arith.constant 0 : index
    %c0_11 = arith.constant 0 : index
    %18 = vector.load %arg7[%c0_10, %c0_11] : memref<8x64xf32, #tpu.memory_space<vmem>>, vector<8x64xf32>
    %cst_12 = arith.constant 0.000000e+00 : f32
    %19 = vector.broadcast %cst_12 : f32 to vector<8x16x64xf32>
    %20 = arith.select %11, %4, %19 : vector<8x16x64xi1>, vector<8x16x64xf32>
    %cst_13 = arith.constant dense<0.000000e+00> : vector<8x64xf32>
    %21 = vector.multi_reduction <add>, %20, %cst_13 [1] : vector<8x16x64xf32> to vector<8x64xf32>
    %22 = arith.addf %18, %21 : vector<8x64xf32>
    %c0_14 = arith.constant 0 : index
    %c0_15 = arith.constant 0 : index
    %23 = vector.load %arg7[%c0_14, %c0_15] : memref<8x64xf32, #tpu.memory_space<vmem>>, vector<8x64xf32>
    tpu.vector_store %arg7[%c0_14, %c0_15], %22 {strides = array<i32>} : memref<8x64xf32, #tpu.memory_space<vmem>>, vector<8x64xf32>,
    %c0_i32_16 = arith.constant 0 : i32
    %24 = arith.cmpi eq, %arg1, %c0_i32_16 : i32
    %25 = arith.extui %24 : i1 to i32
    %c0_i32_17 = arith.constant 0 : i32
    %26 = arith.cmpi ne, %25, %c0_i32_17 : i32
    scf.if %26 {
      %c0_18 = arith.constant 0 : index
      %c0_19 = arith.constant 0 : index
      %27 = vector.load %arg4[%c0_18, %c0_19] : memref<8x64xf32, #tpu.memory_space<vmem>>, vector<8x64xf32>
      %c0_20 = arith.constant 0 : index
      %c0_21 = arith.constant 0 : index
      %28 = vector.load %arg6[%c0_20, %c0_21] : memref<8x64xf32, #tpu.memory_space<vmem>>, vector<8x64xf32>
      %29 = arith.sitofp %3 : vector<8x1xi32> to vector<8x1xf32>
      %cst_22 = arith.constant 9.99999971E-10 : f32
      %30 = vector.broadcast %cst_22 : f32 to vector<8x1xf32>
      %31 = arith.maximumf %29, %30 : vector<8x1xf32>
      %c0_23 = arith.constant 0 : index
      %c0_24 = arith.constant 0 : index
      %32 = vector.load %arg7[%c0_23, %c0_24] : memref<8x64xf32, #tpu.memory_space<vmem>>, vector<8x64xf32>
      %33 = vector.broadcast %31 : vector<8x1xf32> to vector<8x64xf32>
      %34 = arith.divf %32, %33 : vector<8x64xf32>
      %c0_25 = arith.constant 0 : index
      %c0_26 = arith.constant 0 : index
      %35 = vector.load %arg7[%c0_25, %c0_26] : memref<8x64xf32, #tpu.memory_space<vmem>>, vector<8x64xf32>
      %36 = math.sqrt %31 : vector<8x1xf32>
      %37 = vector.broadcast %36 : vector<8x1xf32> to vector<8x64xf32>
      %38 = arith.divf %35, %37 : vector<8x64xf32>
      %39 = tpu.concatenate %27, %28, %34, %38 in 1 : vector<8x64xf32>, vector<8x64xf32>, vector<8x64xf32>, vector<8x64xf32> -> vector<8x256xf32>
      %c0_27 = arith.constant 0 : index
      %c0_28 = arith.constant 0 : index
      %40 = vector.load %arg5[%c0_27, %c0_28] : memref<8x256xf32, #tpu.memory_space<vmem>>, vector<8x256xf32>
      tpu.vector_store %arg5[%c0_27, %c0_28], %39 {strides = array<i32>} : memref<8x256xf32, #tpu.memory_space<vmem>>, vector<8x256xf32>,
    } else {
    }
    return
  }
  func.func @transform_0(%arg0: i32, %arg1: i32) -> (i32, i32) {
    %c0_i32 = arith.constant 0 : i32
    %c0_i32_0 = arith.constant 0 : i32
    return %arg0, %c0_i32 : i32, i32
  }
  func.func @transform_1(%arg0: i32, %arg1: i32) -> (i32, i32, i32) {
    %c0_i32 = arith.constant 0 : i32
    %c0_i32_0 = arith.constant 0 : i32
    return %arg0, %arg1, %c0_i32 : i32, i32, i32
  }
  func.func @transform_2(%arg0: i32, %arg1: i32) -> (i32, i32) {
    %c0_i32 = arith.constant 0 : i32
    %c0_i32_0 = arith.constant 0 : i32
    return %arg0, %c0_i32 : i32, i32
  }
  func.func @transform_3(%arg0: i32, %arg1: i32) -> (i32, i32) {
    %c0_i32 = arith.constant 0 : i32
    %c0_i32_0 = arith.constant 0 : i32
    return %arg0, %c0_i32 : i32, i32
  }
}

</mosaic_0001>

<llo_original>
// kernel: tpu_custom_call.1
$region0: #{tpu_custom_call.1}
  #allocation0 [shape = 'u32[]', space=smem, size = 0x4, offset = 0x4, fixed_abs, tag = 'smem constant byte address 0x4 - core index']
  #allocation1 [shape = 'u32[144,128]{1,0:T(1,128)}', space=vmem, size = 0x12000, scoped, tag = 'internal scratch']
  #allocation2 [shape = 'f32[8,64]{1,0:T(8,128)}', space=vmem, size = 0x1000, scoped, tag = 'scratch operand']
  #allocation3 [shape = 'f32[8,64]{1,0:T(8,128)}', space=vmem, size = 0x1000, scoped, tag = 'scratch operand']
  %s0 = inlined_call_operand.vmem [shape: s32[8,1], index: 0, kind: input, shape index: {}]
  %s1 = inlined_call_operand.hbm [shape: f32[8,16,64], index: 1, kind: input, shape index: {}]
  %s2 = inlined_call_operand.vmem [shape: f32[8,64], index: 2, kind: input, shape index: {}]
  %s3 = inlined_call_operand.hbm [shape: f32[8,256], index: 3, kind: output, shape index: {}]
  %s4 = sld [smem:[#allocation0]]
  $region34: #{tpu_custom_call.1} parent=0
    _
  %s6 = ssub.s32 1, %s4
  %s7 = scalar_select 0, %s6, %s4
  $region1: #{tpu_custom_call.1} parent=0
    #allocation4 [shape = 'u8[65536]{0}', space=vmem, size = 0x10000, scoped, tag = 'input window, operand 1, single buffered']
    #allocation5 [shape = 's32[1]{0}', space=sflag, size = 0x4, scoped, tag = 'scoped memory for tpu_custom_call.1']
    #allocation6 [shape = 's32[1]{0}', space=sflag, size = 0x4, scoped, tag = 'scoped memory for tpu_custom_call.1']
    #allocation7 [shape = 'u8[8192]{0}', space=vmem, size = 0x2000, scoped, tag = 'output window, operand 0, single buffered']
    %8 = vsyncpa [#allocation5], 0
    %9 = vsyncpa [#allocation6], 0
    // Predicated region
    $region2: #{tpu_custom_call.1} parent=1 // pred_check
      _
    $region3: #{tpu_custom_call.1} parent=1 // pred_check_branch
      %11 = sbr.rel (0) target = $region5
    $region4: #{tpu_custom_call.1} parent=1 // pred_region
      _
    $region5: #{tpu_custom_call.1} parent=1 // pred_fallthru
      _
    // Predicated region
    $region6: #{tpu_custom_call.1} parent=1 // pred_check
      _
    $region7: #{tpu_custom_call.1} parent=1 // pred_check_branch
      %13 = sbr.rel (0) target = $region9
    $region8: #{tpu_custom_call.1} parent=1 // pred_region
      %s15 = ssub.s32 2048, 2048
      %16 = vsyncadd [#allocation5], %s15
      %s17 = sshll.u32 [#allocation4], 4
      %s18 = int_to_ptr.vmem [resolvable:$true] %s17
      %23 = dma.hbm_to_vmem [thread:$0]  %s1, 2048, %s18, [#allocation5], 128, 128, 8
    $region9: #{tpu_custom_call.1} parent=1 // pred_fallthru
      _
    // Predicated region
    $region10: #{tpu_custom_call.1} parent=1 // pred_check
      _
    $region11: #{tpu_custom_call.1} parent=1 // pred_check_branch
      %25 = sbr.rel (0) target = $region13
    $region12: #{tpu_custom_call.1} parent=1 // pred_region
      _
    $region13: #{tpu_custom_call.1} parent=1 // pred_fallthru
      _
    // Predicated region
    $region14: #{tpu_custom_call.1} parent=1 // pred_check
      _
    $region15: #{tpu_custom_call.1} parent=1 // pred_check_branch
      %27 = sbr.rel (0) target = $region17
    $region16: #{tpu_custom_call.1} parent=1 // pred_region
      %28 = dma.done [#allocation5], 2048
    $region17: #{tpu_custom_call.1} parent=1 // pred_fallthru
      _
    %p29 = scmp.eq.s32.totalorder 0, 0
    // Predicated region
    $region18: #{tpu_custom_call.1} parent=1 // pred_check
      %p30 = pneg %p29
    $region19: #{tpu_custom_call.1} parent=1 // pred_check_branch
      %32 = sbr.rel (%p30) target = $region21
    $region20: #{tpu_custom_call.1} parent=1 // pred_region
      %vm33 = vcmask 523264
      %34 = vst.msk [vmem:[#allocation2] sm:$0xff] %vm33, -1e+09
      %35 = vst.msk [vmem:[#allocation3] sm:$0xff] %vm33, 0.0
    $region21: #{tpu_custom_call.1} parent=1 // pred_fallthru
      _
    %v36 = vld [vmem:[%s0] sm:$0xff]
    %v37 = vld [vmem:[#allocation4] sm:$0xff]
    %v38 = vld [vmem:[#allocation4 + $0x8] sm:$0xff]
    %v39 = vld [vmem:[#allocation4 + $0x10] sm:$0xff]
    %v40 = vld [vmem:[#allocation4 + $0x18] sm:$0xff]
    %v41 = vld [vmem:[#allocation4 + $0x20] sm:$0xff]
    %v42 = vld [vmem:[#allocation4 + $0x28] sm:$0xff]
    %v43 = vld [vmem:[#allocation4 + $0x30] sm:$0xff]
    %v44 = vld [vmem:[#allocation4 + $0x38] sm:$0xff]
    %v45 = vld [vmem:[#allocation4 + $0x40] sm:$0xff]
    %v46 = vld [vmem:[#allocation4 + $0x48] sm:$0xff]
    %v47 = vld [vmem:[#allocation4 + $0x50] sm:$0xff]
    %v48 = vld [vmem:[#allocation4 + $0x58] sm:$0xff]
    %v49 = vld [vmem:[#allocation4 + $0x60] sm:$0xff]
    %v50 = vld [vmem:[#allocation4 + $0x68] sm:$0xff]
    %v51 = vld [vmem:[#allocation4 + $0x70] sm:$0xff]
    %v52 = vld [vmem:[#allocation4 + $0x78] sm:$0xff]
    %v53 = vlaneseq
    %v54 = vshrl.u32 %v53, 7
    %v55 = vadd.s32 %v54, 8
    %s56 = smul.u32 0, 16
    %v57 = vstv %s56
    %v58 = vadd.s32 %v54, %v57
    %v59 = vadd.s32 %v55, %v57
    %v60 = vcombine.high %v36, %v36
    %v62 = vunpack.c.l.s4 1966171168
    %v63 = vunpack.c.0.s8 %v62
    %v64 = vlaneseq
    %v65 = vshrl.u32 %v64, 7
    %v66 = vsub.s32 %v63, %v65
    %v67 = vrot.slane %v36, %v66
    %v69 = vunpack.c.l.s4 1966171168
    %v70 = vunpack.c.0.s8 %v69
    %v71 = vlaneseq
    %v72 = vshrl.u32 %v71, 7
    %v73 = vsub.s32 %v70, %v72
    %v74 = vrot.slane %v60, %v73
    %v75 = vcombine.high %v67, %v67
    %v76 = vcombine.high %v74, %v74
    %v78 = vunpack.c.l.s4 1966171168
    %v79 = vunpack.c.0.s8 %v78
    %v80 = vlaneseq
    %v81 = vshrl.u32 %v80, 7
    %v82 = vsub.s32 %v79, %v81
    %v83 = vrot.slane %v67, %v82
    %v85 = vunpack.c.l.s4 1966171168
    %v86 = vunpack.c.0.s8 %v85
    %v87 = vlaneseq
    %v88 = vshrl.u32 %v87, 7
    %v89 = vsub.s32 %v86, %v88
    %v90 = vrot.slane %v74, %v89
    %v92 = vunpack.c.l.s4 1966171168
    %v93 = vunpack.c.0.s8 %v92
    %v94 = vlaneseq
    %v95 = vshrl.u32 %v94, 7
    %v96 = vsub.s32 %v93, %v95
    %v97 = vrot.slane %v75, %v96
    %v99 = vunpack.c.l.s4 1966171168
    %v100 = vunpack.c.0.s8 %v99
    %v101 = vlaneseq
    %v102 = vshrl.u32 %v101, 7
    %v103 = vsub.s32 %v100, %v102
    %v104 = vrot.slane %v76, %v103
    %v105 = vcombine.high %v83, %v83
    %v106 = vcombine.high %v90, %v90
    %v107 = vcombine.high %v97, %v97
    %v108 = vcombine.high %v104, %v104
    %v109 = vlaneseq
    %v110 = vshrl.u32 %v109, 7
    %v111 = vsub.s32 0, %v110
    %v112 = vrot.slane %v83, %v111
    %v113 = vlaneseq
    %v114 = vshrl.u32 %v113, 7
    %v115 = vsub.s32 0, %v114
    %v116 = vrot.slane %v97, %v115
    %v117 = vlaneseq
    %v118 = vshrl.u32 %v117, 7
    %v119 = vsub.s32 0, %v118
    %v120 = vrot.slane %v105, %v119
    %v121 = vlaneseq
    %v122 = vshrl.u32 %v121, 7
    %v123 = vsub.s32 0, %v122
    %v124 = vrot.slane %v107, %v123
    %v125 = vlaneseq
    %v126 = vshrl.u32 %v125, 7
    %v127 = vsub.s32 0, %v126
    %v128 = vrot.slane %v90, %v127
    %v129 = vlaneseq
    %v130 = vshrl.u32 %v129, 7
    %v131 = vsub.s32 0, %v130
    %v132 = vrot.slane %v104, %v131
    %v133 = vlaneseq
    %v134 = vshrl.u32 %v133, 7
    %v135 = vsub.s32 0, %v134
    %v136 = vrot.slane %v106, %v135
    %v137 = vlaneseq
    %v138 = vshrl.u32 %v137, 7
    %v139 = vsub.s32 0, %v138
    %v140 = vrot.slane %v108, %v139
    %141 = vset.pattern.permute.xlu0 0
    %142 = vperm.xlu0 %141, %v112
    %v143 = vpop.permute.xlu0 %142
    %144 = vset.pattern.permute.xlu0 0
    %145 = vperm.xlu0 %144, %v116
    %v146 = vpop.permute.xlu0 %145
    %147 = vset.pattern.permute.xlu0 0
    %148 = vperm.xlu0 %147, %v120
    %v149 = vpop.permute.xlu0 %148
    %150 = vset.pattern.permute.xlu0 0
    %151 = vperm.xlu0 %150, %v124
    %v152 = vpop.permute.xlu0 %151
    %153 = vset.pattern.permute.xlu0 0
    %154 = vperm.xlu0 %153, %v128
    %v155 = vpop.permute.xlu0 %154
    %156 = vset.pattern.permute.xlu0 0
    %157 = vperm.xlu0 %156, %v132
    %v158 = vpop.permute.xlu0 %157
    %159 = vset.pattern.permute.xlu0 0
    %160 = vperm.xlu0 %159, %v136
    %v161 = vpop.permute.xlu0 %160
    %162 = vset.pattern.permute.xlu0 0
    %163 = vperm.xlu0 %162, %v140
    %v164 = vpop.permute.xlu0 %163
    %vm165 = vcmp.lt.s32.totalorder %v58, %v143
    %vm166 = vcmp.lt.s32.totalorder %v59, %v143
    %vm167 = vcmp.lt.s32.totalorder %v58, %v146
    %vm168 = vcmp.lt.s32.totalorder %v59, %v146
    %vm169 = vcmp.lt.s32.totalorder %v58, %v149
    %vm170 = vcmp.lt.s32.totalorder %v59, %v149
    %vm171 = vcmp.lt.s32.totalorder %v58, %v152
    %vm172 = vcmp.lt.s32.totalorder %v59, %v152
    %vm173 = vcmp.lt.s32.totalorder %v58, %v155
    %vm174 = vcmp.lt.s32.totalorder %v59, %v155
    %vm175 = vcmp.lt.s32.totalorder %v58, %v158
    %vm176 = vcmp.lt.s32.totalorder %v59, %v158
    %vm177 = vcmp.lt.s32.totalorder %v58, %v161
    %vm178 = vcmp.lt.s32.totalorder %v59, %v161
    %vm179 = vcmp.lt.s32.totalorder %v58, %v164
    %vm180 = vcmp.lt.s32.totalorder %v59, %v164
    %v181 = vsel %vm165, %v37, -1e+09
    %v182 = vsel %vm166, %v38, -1e+09
    %v183 = vsel %vm167, %v39, -1e+09
    %v184 = vsel %vm168, %v40, -1e+09
    %v185 = vsel %vm169, %v41, -1e+09
    %v186 = vsel %vm170, %v42, -1e+09
    %v187 = vsel %vm171, %v43, -1e+09
    %v188 = vsel %vm172, %v44, -1e+09
    %v189 = vsel %vm173, %v45, -1e+09
    %v190 = vsel %vm174, %v46, -1e+09
    %v191 = vsel %vm175, %v47, -1e+09
    %v192 = vsel %vm176, %v48, -1e+09
    %v193 = vsel %vm177, %v49, -1e+09
    %v194 = vsel %vm178, %v50, -1e+09
    %v195 = vsel %vm179, %v51, -1e+09
    %v196 = vsel %vm180, %v52, -1e+09
    %vm197 = vcmask 523264
    %v198 = vsel %vm197, %v181, -inf
    %v199 = vsel %vm197, %v182, -inf
    %v200 = vmax.f32 %v198, %v199
    %v201 = vrot.slane %v200, 4
    %v202 = vmax.f32 %v200, %v201
    %v203 = vrot.slane %v202, 2
    %v204 = vmax.f32 %v202, %v203
    %v205 = vrot.slane %v204, 1
    %v206 = vmax.f32 %v204, %v205
    %v207 = vsel %vm197, %v183, -inf
    %v208 = vsel %vm197, %v184, -inf
    %v209 = vmax.f32 %v207, %v208
    %v210 = vrot.slane %v209, 4
    %v211 = vmax.f32 %v209, %v210
    %v212 = vrot.slane %v211, 2
    %v213 = vmax.f32 %v211, %v212
    %v214 = vrot.slane %v213, 1
    %v215 = vmax.f32 %v213, %v214
    %v216 = vsel %vm197, %v185, -inf
    %v217 = vsel %vm197, %v186, -inf
    %v218 = vmax.f32 %v216, %v217
    %v219 = vrot.slane %v218, 4
    %v220 = vmax.f32 %v218, %v219
    %v221 = vrot.slane %v220, 2
    %v222 = vmax.f32 %v220, %v221
    %v223 = vrot.slane %v222, 1
    %v224 = vmax.f32 %v222, %v223
    %v225 = vsel %vm197, %v187, -inf
    %v226 = vsel %vm197, %v188, -inf
    %v227 = vmax.f32 %v225, %v226
    %v228 = vrot.slane %v227, 4
    %v229 = vmax.f32 %v227, %v228
    %v230 = vrot.slane %v229, 2
    %v231 = vmax.f32 %v229, %v230
    %v232 = vrot.slane %v231, 1
    %v233 = vmax.f32 %v231, %v232
    %v234 = vsel %vm197, %v189, -inf
    %v235 = vsel %vm197, %v190, -inf
    %v236 = vmax.f32 %v234, %v235
    %v237 = vrot.slane %v236, 4
    %v238 = vmax.f32 %v236, %v237
    %v239 = vrot.slane %v238, 2
    %v240 = vmax.f32 %v238, %v239
    %v241 = vrot.slane %v240, 1
    %v242 = vmax.f32 %v240, %v241
    %v243 = vsel %vm197, %v191, -inf
    %v244 = vsel %vm197, %v192, -inf
    %v245 = vmax.f32 %v243, %v244
    %v246 = vrot.slane %v245, 4
    %v247 = vmax.f32 %v245, %v246
    %v248 = vrot.slane %v247, 2
    %v249 = vmax.f32 %v247, %v248
    %v250 = vrot.slane %v249, 1
    %v251 = vmax.f32 %v249, %v250
    %v252 = vsel %vm197, %v193, -inf
    %v253 = vsel %vm197, %v194, -inf
    %v254 = vmax.f32 %v252, %v253
    %v255 = vrot.slane %v254, 4
    %v256 = vmax.f32 %v254, %v255
    %v257 = vrot.slane %v256, 2
    %v258 = vmax.f32 %v256, %v257
    %v259 = vrot.slane %v258, 1
    %v260 = vmax.f32 %v258, %v259
    %v261 = vsel %vm197, %v195, -inf
    %v262 = vsel %vm197, %v196, -inf
    %v263 = vmax.f32 %v261, %v262
    %v264 = vrot.slane %v263, 4
    %v265 = vmax.f32 %v263, %v264
    %v266 = vrot.slane %v265, 2
    %v267 = vmax.f32 %v265, %v266
    %v268 = vrot.slane %v267, 1
    %v269 = vmax.f32 %v267, %v268
    %v270 = vld [vmem:[#allocation2] sm:$0xff]
    %vm279 = vcmask 1041409
    %v280 = vsel %vm279, %v215, %v206
    %vm281 = vcmask 1042434
    %v282 = vsel %vm281, %v224, %v280
    %vm283 = vcmask 1043459
    %v284 = vsel %vm283, %v233, %v282
    %vm285 = vcmask 1044484
    %v286 = vsel %vm285, %v242, %v284
    %vm287 = vcmask 1045509
    %v288 = vsel %vm287, %v251, %v286
    %vm289 = vcmask 1046534
    %v290 = vsel %vm289, %v260, %v288
    %vm291 = vcmask 1047559
    %v292 = vsel %vm291, %v269, %v290
    %v294 = vmax.f32 %v270, %v292
    %295 = vst.msk [vmem:[#allocation2] sm:$0xff] %vm197, %v294
    %v296 = vld [vmem:[#allocation3] sm:$0xff]
    %v297 = vsel %vm165, %v37, 0.0
    %v298 = vsel %vm166, %v38, 0.0
    %v299 = vsel %vm167, %v39, 0.0
    %v300 = vsel %vm168, %v40, 0.0
    %v301 = vsel %vm169, %v41, 0.0
    %v302 = vsel %vm170, %v42, 0.0
    %v303 = vsel %vm171, %v43, 0.0
    %v304 = vsel %vm172, %v44, 0.0
    %v305 = vsel %vm173, %v45, 0.0
    %v306 = vsel %vm174, %v46, 0.0
    %v307 = vsel %vm175, %v47, 0.0
    %v308 = vsel %vm176, %v48, 0.0
    %v309 = vsel %vm177, %v49, 0.0
    %v310 = vsel %vm178, %v50, 0.0
    %v311 = vsel %vm179, %v51, 0.0
    %v312 = vsel %vm180, %v52, 0.0
    %v313 = vsel %vm197, %v297, 0.0
    %v314 = vsel %vm197, %v298, 0.0
    %v315 = vadd.f32 %v313, %v314
    %v316 = vrot.slane %v315, 4
    %v317 = vadd.f32 %v315, %v316
    %v318 = vrot.slane %v317, 2
    %v319 = vadd.f32 %v317, %v318
    %v320 = vrot.slane %v319, 1
    %v321 = vadd.f32 %v319, %v320
    %v322 = vsel %vm197, %v299, 0.0
    %v323 = vsel %vm197, %v300, 0.0
    %v324 = vadd.f32 %v322, %v323
    %v325 = vrot.slane %v324, 4
    %v326 = vadd.f32 %v324, %v325
    %v327 = vrot.slane %v326, 2
    %v328 = vadd.f32 %v326, %v327
    %v329 = vrot.slane %v328, 1
    %v330 = vadd.f32 %v328, %v329
    %v331 = vsel %vm197, %v301, 0.0
    %v332 = vsel %vm197, %v302, 0.0
    %v333 = vadd.f32 %v331, %v332
    %v334 = vrot.slane %v333, 4
    %v335 = vadd.f32 %v333, %v334
    %v336 = vrot.slane %v335, 2
    %v337 = vadd.f32 %v335, %v336
    %v338 = vrot.slane %v337, 1
    %v339 = vadd.f32 %v337, %v338
    %v340 = vsel %vm197, %v303, 0.0
    %v341 = vsel %vm197, %v304, 0.0
    %v342 = vadd.f32 %v340, %v341
    %v343 = vrot.slane %v342, 4
    %v344 = vadd.f32 %v342, %v343
    %v345 = vrot.slane %v344, 2
    %v346 = vadd.f32 %v344, %v345
    %v347 = vrot.slane %v346, 1
    %v348 = vadd.f32 %v346, %v347
    %v349 = vsel %vm197, %v305, 0.0
    %v350 = vsel %vm197, %v306, 0.0
    %v351 = vadd.f32 %v349, %v350
    %v352 = vrot.slane %v351, 4
    %v353 = vadd.f32 %v351, %v352
    %v354 = vrot.slane %v353, 2
    %v355 = vadd.f32 %v353, %v354
    %v356 = vrot.slane %v355, 1
    %v357 = vadd.f32 %v355, %v356
    %v358 = vsel %vm197, %v307, 0.0
    %v359 = vsel %vm197, %v308, 0.0
    %v360 = vadd.f32 %v358, %v359
    %v361 = vrot.slane %v360, 4
    %v362 = vadd.f32 %v360, %v361
    %v363 = vrot.slane %v362, 2
    %v364 = vadd.f32 %v362, %v363
    %v365 = vrot.slane %v364, 1
    %v366 = vadd.f32 %v364, %v365
    %v367 = vsel %vm197, %v309, 0.0
    %v368 = vsel %vm197, %v310, 0.0
    %v369 = vadd.f32 %v367, %v368
    %v370 = vrot.slane %v369, 4
    %v371 = vadd.f32 %v369, %v370
    %v372 = vrot.slane %v371, 2
    %v373 = vadd.f32 %v371, %v372
    %v374 = vrot.slane %v373, 1
    %v375 = vadd.f32 %v373, %v374
    %v376 = vsel %vm197, %v311, 0.0
    %v377 = vsel %vm197, %v312, 0.0
    %v378 = vadd.f32 %v376, %v377
    %v379 = vrot.slane %v378, 4
    %v380 = vadd.f32 %v378, %v379
    %v381 = vrot.slane %v380, 2
    %v382 = vadd.f32 %v380, %v381
    %v383 = vrot.slane %v382, 1
    %v384 = vadd.f32 %v382, %v383
    %v393 = vsel %vm279, %v330, %v321
    %v394 = vsel %vm281, %v339, %v393
    %v395 = vsel %vm283, %v348, %v394
    %v396 = vsel %vm285, %v357, %v395
    %v397 = vsel %vm287, %v366, %v396
    %v398 = vsel %vm289, %v375, %v397
    %v399 = vsel %vm291, %v384, %v398
    %v401 = vadd.f32 %v296, %v399
    %402 = vst.msk [vmem:[#allocation3] sm:$0xff] %vm197, %v401
    // Predicated region
    $region22: #{tpu_custom_call.1} parent=1 // pred_check
      %p403 = pneg %p29
    $region23: #{tpu_custom_call.1} parent=1 // pred_check_branch
      %405 = sbr.rel (%p403) target = $region25
    $region24: #{tpu_custom_call.1} parent=1 // pred_region
      %v406 = vld [vmem:[%s2] sm:$0xff]
      %v407 = vld [vmem:[#allocation2] sm:$0xff]
      %v408 = vcvt.s32.f32 %v36
      %v409 = vmax.f32 %v408, 1e-09
      %v410 = vld [vmem:[#allocation3] sm:$0xff]
      %412 = vset.pattern.permute.xlu0 0
      %413 = vperm.xlu0 %412, %v409
      %v414 = vpop.permute.xlu0 %413
      %v416 = vrcp.pop %v414
      %v417 = vmul.f32 %v410, %v416
      %v418 = vrsqrt.pop %v409
      %v419 = vmul.f32 %v409, %v418
      %vm420 = vcmp.eq.f32.partialorder %v409, inf
      %v421 = vsel %vm420, %v409, %v419
      %vm422 = vcmp.eq.f32.partialorder %v409, 0.0
      %v423 = vand.u32 %v409, 2147483648
      %v424 = vsel %vm422, %v423, %v421
      %426 = vset.pattern.permute.xlu0 0
      %427 = vperm.xlu0 %426, %v424
      %v428 = vpop.permute.xlu0 %427
      %v430 = vrcp.pop %v428
      %v431 = vmul.f32 %v410, %v430
      %433 = vrot.lane.b32.xlu0 %v407, 64
      %v434 = vpop.permute.xlu0 %433
      %437 = vrot.lane.b32.xlu0 %v431, 64
      %v438 = vpop.permute.xlu0 %437
      %v440 = vsel %vm197, %v406, %v434
      %v441 = vsel %vm197, %v417, %v438
      %442 = vst [vmem:[#allocation7] sm:$0xff] %v440
      %443 = vst [vmem:[#allocation7 + $0x8] sm:$0xff] %v441
    $region25: #{tpu_custom_call.1} parent=1 // pred_fallthru
      _
    // Predicated region
    $region26: #{tpu_custom_call.1} parent=1 // pred_check
      _
    $region27: #{tpu_custom_call.1} parent=1 // pred_check_branch
      %445 = sbr.rel (0) target = $region29
    $region28: #{tpu_custom_call.1} parent=1 // pred_region
      %s447 = ssub.s32 256, 256
      %448 = vsyncadd [#allocation6], %s447
      %s450 = sshll.u32 [#allocation7], 4
      %s451 = int_to_ptr.vmem [resolvable:$true] %s450
      %453 = dma.vmem_to_hbm [thread:$0]  %s451, 256, %s3, [#allocation6]
    $region29: #{tpu_custom_call.1} parent=1 // pred_fallthru
      _
    // Predicated region
    $region30: #{tpu_custom_call.1} parent=1 // pred_check
      _
    $region31: #{tpu_custom_call.1} parent=1 // pred_check_branch
      %455 = sbr.rel (0) target = $region33
    $region32: #{tpu_custom_call.1} parent=1 // pred_region
      %456 = dma.done [#allocation6], 256
    $region33: #{tpu_custom_call.1} parent=1 // pred_fallthru
      _
    %457 = vsyncpa [#allocation5], 1
    %458 = vsyncpa [#allocation6], 1

</llo_original>
